<compile_context>
chip_gen: v5e
topology: v5e:2x2
jax: 0.10.0
libtpu: 0.0.40
codegen_flags: <defaults>
</compile_context>

<pallas_src>
import jax
import jax.numpy as jnp
from jax.experimental import pallas as pl
from jax.experimental.pallas import tpu as pltpu  # noqa: F401  (TPU backend)


def _gcngru_kernel(c1_ref, w_ref, b_ref, att_ref, o_ref):
    """One GRU-GCN cell step with the whole batch folded into the lane dim.

    c1 : (N, B*(H+D))   lanes = [h (B*H) | x (B*D)], batch-major per group
    w  : (B*(H+D), 3*B*H)  cols = [gc1 gammas | gc1 betas | gc2].
         gc1 rows follow the c1 lane order [h | x]; gc2 rows follow the
         combine2 lane order [reset*h | x].
    b  : (1, 3*B*H)     [gc1 gamma bias | gc1 beta bias | gc2 bias]
    att: (2, N, N)      [att1, att2]
    o  : (N, B*H)
    """
    bh = o_ref.shape[1]                              # B*H
    c1 = c1_ref[...]
    h = c1[:, :bh]                                   # (N, B*H)
    x = c1[:, bh:]                                   # (N, B*D)

    # ---- gc1: one feature matmul + one att matmul covers both gates ------
    sup1 = jnp.dot(c1, w_ref[:, :2 * bh], preferred_element_type=jnp.float32)
    g = (jnp.dot(att_ref[0], sup1, preferred_element_type=jnp.float32)
         + b_ref[:, :2 * bh])
    gates = jax.nn.sigmoid(g)                        # one fused sigmoid
    reset_gate = gates[:, :bh]                       # gammas (batch-major)
    update_gate = gates[:, bh:]                      # betas  (batch-major)

    # ---- gc2: combine2 = [reset*h | x]; x keeps its c1 lane positions ----
    c2 = jnp.concatenate([reset_gate * h, x], axis=1)       # (N, B*(H+D))
    sup2 = jnp.dot(c2, w_ref[:, 2 * bh:], preferred_element_type=jnp.float32)
    cc = (jnp.dot(att_ref[1], sup2, preferred_element_type=jnp.float32)
          + b_ref[:, 2 * bh:])
    cnm = jnp.tanh(cc)

    h_next = (1.0 - update_gate) * h + update_gate * cnm
    o_ref[...] = h_next.astype(o_ref.dtype)


def prepare_gcngru_params(params, batch):
    """Fold parameters for the lane-folded kernel.

    Call ONCE per parameter set / batch size (outside the per-step path) and
    reuse the result across every forward step.
    """
    w1, b1 = params["w1"], params["b1"]        # (H+D, 2H), (2H,)
    w2, b2 = params["w2"], params["b2"]        # (H+D, H),  (H,)
    att1, att2 = params["att1"], params["att2"]
    H = b2.shape[0]
    D = w1.shape[0] - H
    B = batch
    eye_b = jnp.eye(B, dtype=w1.dtype)
    kr = lambda m: jnp.kron(eye_b, m)

    # gc1: rows ordered [h-block | x-block] (matches c1 = [h | x] lanes),
    #      cols ordered [all gammas | all betas], batch-major within groups.
    gc1_bd = jnp.concatenate(
        [jnp.concatenate([kr(w1[:H, :H]), kr(w1[:H, H:])], axis=1),   # h rows
         jnp.concatenate([kr(w1[H:, :H]), kr(w1[H:, H:])], axis=1)],  # x rows
        axis=0)                                       # (B*(H+D), 2*B*H)

    # gc2: rows ordered [reset*h-block | x-block] (matches combine2 lanes).
    gc2_bd = jnp.concatenate([kr(w2[D:, :]),          # rows acting on reset*h
                              kr(w2[:D, :])],         # rows acting on x
                             axis=0)                  # (B*(H+D), B*H)

    w_all = jnp.concatenate([gc1_bd, gc2_bd], axis=1)            # (.., 3*B*H)
    b_all = jnp.concatenate([jnp.tile(b1[:H], B),
                             jnp.tile(b1[H:], B),
                             jnp.tile(b2, B)]).reshape(1, 3 * B * H)
    att_pack = jnp.stack([att1, att2], axis=0)                   # (2, N, N)
    return {"w": w_all, "b": b_all, "att": att_pack}


def gcngru_cell_folded(h_t, x_t, prep):
    """Lane-folded cell step: h_t (N, B*H), x_t (N, B*D) -> (N, B*H).

    Use this form inside a recurrent loop so the state never leaves the
    folded layout between steps (no per-step transposes).
    """
    N, bh = h_t.shape
    c1_t = jnp.concatenate([h_t, x_t], axis=1)        # (N, B*(H+D))
    return pl.pallas_call(
        _gcngru_kernel,
        out_shape=jax.ShapeDtypeStruct((N, bh), h_t.dtype),
    )(c1_t, prep["w"], prep["b"], prep["att"])


def gcngru_block_forward(h, x, prep):
    """h: (B, N, H), x: (B, N, D) -> (B, N, H).  Mirrors GCNGRU_Block.forward
    with a single fold/unfold around the lane-folded cell."""
    B, N, H = h.shape
    D = x.shape[2]
    h_t = jnp.transpose(h, (1, 0, 2)).reshape(N, B * H)
    x_t = jnp.transpose(x, (1, 0, 2)).reshape(N, B * D)
    out_t = gcngru_cell_folded(h_t, x_t, prep)
    return jnp.transpose(out_t.reshape(N, B, H), (1, 0, 2))


def gcngru_block_reference(h, x, params):
    """Pure-JAX reference mirroring the PyTorch forward exactly."""
    H = h.shape[2]
    w1, b1, att1 = params["w1"], params["b1"], params["att1"]
    w2, b2, att2 = params["w2"], params["b2"], params["att2"]

    def gc(inp, w, att, b):
        support = jnp.einsum("bnf,fo->bno", inp, w)
        out = jnp.einsum("mn,bno->bmo", att, support)
        return out + b

    combine = jnp.concatenate([h, x], axis=2)
    combine_gcn = gc(combine, w1, att1, b1)
    gamma, beta = combine_gcn[..., :H], combine_gcn[..., H:]
    reset_gate = jax.nn.sigmoid(gamma)
    update_gate = jax.nn.sigmoid(beta)
    combine2 = jnp.concatenate([x, reset_gate * h], axis=2)
    cnm = jnp.tanh(gc(combine2, w2, att2, b2))
    return (1.0 - update_gate) * h + update_gate * cnm


def make_params(key, input_dim, hidden_dim, node_n):
    """Deterministic synthetic parameters (uniform, like reset_parameters)."""
    ks = jax.random.split(key, 6)
    in1, out1 = input_dim + hidden_dim, 2 * hidden_dim
    in2, out2 = input_dim + hidden_dim, hidden_dim
    stdv1 = 1.0 / (out1 ** 0.5)
    stdv2 = 1.0 / (out2 ** 0.5)
    return {
        "w1": jax.random.uniform(ks[0], (in1, out1), jnp.float32, -stdv1, stdv1),
        "att1": jax.random.uniform(ks[1], (node_n, node_n), jnp.float32, -stdv1, stdv1),
        "b1": jax.random.uniform(ks[2], (out1,), jnp.float32, -stdv1, stdv1),
        "w2": jax.random.uniform(ks[3], (in2, out2), jnp.float32, -stdv2, stdv2),
        "att2": jax.random.uniform(ks[4], (node_n, node_n), jnp.float32, -stdv2, stdv2),
        "b2": jax.random.uniform(ks[5], (out2,), jnp.float32, -stdv2, stdv2),
    }


if __name__ == "__main__":
    # B=4, H=32 -> B*H = 128: lane-dense output, tile-aligned gate/h/x splits.
    B, input_dim, hidden_dim, node_n = 4, 4, 32, 48

    key = jax.random.PRNGKey(0)
    kh, kx, kp = jax.random.split(key, 3)
    h = jax.random.normal(kh, (B, node_n, hidden_dim), jnp.float32)
    x = jax.random.normal(kx, (B, node_n, input_dim), jnp.float32)
    params = make_params(kp, input_dim, hidden_dim, node_n)

    # Parameter prep (kron block-diag fold, bias/att packing) runs ONCE here,
    # outside the per-step path, and is reused for every forward call.
    prep = {k: jax.block_until_ready(v)
            for k, v in prepare_gcngru_params(params, B).items()}

    fwd = jax.jit(gcngru_block_forward)
    h_next = jax.block_until_ready(fwd(h, x, prep))

    ref = gcngru_block_reference(h, x, params)
    assert h_next.shape == (B, node_n, hidden_dim)
    assert jnp.allclose(h_next, ref, atol=1e-4, rtol=1e-4), "mismatch vs reference"

    print("KERNEL_OK")
</pallas_src>

<mosaic_0001>
module attributes {stable_mosaic.version = 11 : i64} {
  func.func @_gcngru_kernel(%arg0: memref<48x144xf32, #tpu.memory_space<vmem>>, %arg1: memref<144x384xf32, #tpu.memory_space<vmem>>, %arg2: memref<1x384xf32, #tpu.memory_space<vmem>>, %arg3: memref<2x48x48xf32, #tpu.memory_space<vmem>>, %arg4: memref<48x128xf32, #tpu.memory_space<vmem>>) attributes {dimension_semantics = [], scalar_prefetch = 0 : i64, scratch_operands = 0 : i64, tpu.core_type = #tpu.core_type<tc>} {
    %c0 = arith.constant 0 : index
    %c0_0 = arith.constant 0 : index
    %0 = vector.load %arg0[%c0, %c0_0] : memref<48x144xf32, #tpu.memory_space<vmem>>, vector<48x144xf32>
    %1 = vector.extract_strided_slice %0 {offsets = [0, 0], sizes = [48, 128], strides = [1, 1]} : vector<48x144xf32> to vector<48x128xf32>
    %2 = vector.extract_strided_slice %0 {offsets = [0, 128], sizes = [48, 16], strides = [1, 1]} : vector<48x144xf32> to vector<48x16xf32>
    %c0_1 = arith.constant 0 : index
    %c0_2 = arith.constant 0 : index
    %3 = vector.load %arg1[%c0_1, %c0_2] : memref<144x384xf32, #tpu.memory_space<vmem>>, vector<144x256xf32>
    %cst = arith.constant dense<0.000000e+00> : vector<48x256xf32>
    %4 = tpu.matmul %0, %3, %cst {dimension_numbers = #tpu.dot_dimension_numbers<[1], [0], [0], [1], [0, 0, 1, 1], [], []>} : vector<48x144xf32>, vector<144x256xf32>, vector<48x256xf32> -> vector<48x256xf32>
    %c0_3 = arith.constant 0 : index
    %c0_4 = arith.constant 0 : index
    %c0_5 = arith.constant 0 : index
    %5 = vector.load %arg3[%c0_3, %c0_4, %c0_5] : memref<2x48x48xf32, #tpu.memory_space<vmem>>, vector<1x48x48xf32>
    %6 = vector.shape_cast %5 : vector<1x48x48xf32> to vector<48x48xf32>
    %cst_6 = arith.constant dense<0.000000e+00> : vector<48x256xf32>
    %7 = tpu.matmul %6, %4, %cst_6 {dimension_numbers = #tpu.dot_dimension_numbers<[1], [0], [0], [1], [0, 0, 1, 1], [], []>} : vector<48x48xf32>, vector<48x256xf32>, vector<48x256xf32> -> vector<48x256xf32>
    %c0_7 = arith.constant 0 : index
    %c0_8 = arith.constant 0 : index
    %8 = vector.load %arg2[%c0_7, %c0_8] : memref<1x384xf32, #tpu.memory_space<vmem>>, vector<1x256xf32>
    %9 = vector.broadcast %8 : vector<1x256xf32> to vector<48x256xf32>
    %10 = arith.addf %7, %9 : vector<48x256xf32>
    %11 = arith.negf %10 : vector<48x256xf32>
    %12 = math.exp %11 : vector<48x256xf32>
    %cst_9 = arith.constant 1.000000e+00 : f32
    %13 = vector.broadcast %cst_9 : f32 to vector<48x256xf32>
    %14 = arith.addf %13, %12 : vector<48x256xf32>
    %15 = arith.divf %13, %14 : vector<48x256xf32>
    %16 = vector.extract_strided_slice %15 {offsets = [0, 0], sizes = [48, 128], strides = [1, 1]} : vector<48x256xf32> to vector<48x128xf32>
    %17 = vector.extract_strided_slice %15 {offsets = [0, 128], sizes = [48, 128], strides = [1, 1]} : vector<48x256xf32> to vector<48x128xf32>
    %18 = arith.mulf %16, %1 : vector<48x128xf32>
    %19 = tpu.concatenate %18, %2 in 1 : vector<48x128xf32>, vector<48x16xf32> -> vector<48x144xf32>
    %c0_10 = arith.constant 0 : index
    %c256 = arith.constant 256 : index
    %20 = vector.load %arg1[%c0_10, %c256] : memref<144x384xf32, #tpu.memory_space<vmem>>, vector<144x128xf32>
    %cst_11 = arith.constant dense<0.000000e+00> : vector<48x128xf32>
    %21 = tpu.matmul %19, %20, %cst_11 {dimension_numbers = #tpu.dot_dimension_numbers<[1], [0], [0], [1], [0, 0, 1, 1], [], []>} : vector<48x144xf32>, vector<144x128xf32>, vector<48x128xf32> -> vector<48x128xf32>
    %c1 = arith.constant 1 : index
    %c0_12 = arith.constant 0 : index
    %c0_13 = arith.constant 0 : index
    %22 = vector.load %arg3[%c1, %c0_12, %c0_13] : memref<2x48x48xf32, #tpu.memory_space<vmem>>, vector<1x48x48xf32>
    %23 = vector.shape_cast %22 : vector<1x48x48xf32> to vector<48x48xf32>
    %cst_14 = arith.constant dense<0.000000e+00> : vector<48x128xf32>
    %24 = tpu.matmul %23, %21, %cst_14 {dimension_numbers = #tpu.dot_dimension_numbers<[1], [0], [0], [1], [0, 0, 1, 1], [], []>} : vector<48x48xf32>, vector<48x128xf32>, vector<48x128xf32> -> vector<48x128xf32>
    %c0_15 = arith.constant 0 : index
    %c256_16 = arith.constant 256 : index
    %25 = vector.load %arg2[%c0_15, %c256_16] : memref<1x384xf32, #tpu.memory_space<vmem>>, vector<1x128xf32>
    %26 = vector.broadcast %25 : vector<1x128xf32> to vector<48x128xf32>
    %27 = arith.addf %24, %26 : vector<48x128xf32>
    %28 = math.tanh %27 : vector<48x128xf32>
    %cst_17 = arith.constant 1.000000e+00 : f32
    %29 = vector.broadcast %cst_17 : f32 to vector<48x128xf32>
    %30 = arith.subf %29, %17 : vector<48x128xf32>
    %31 = arith.mulf %30, %1 : vector<48x128xf32>
    %32 = arith.mulf %17, %28 : vector<48x128xf32>
    %33 = arith.addf %31, %32 : vector<48x128xf32>
    %c0_18 = arith.constant 0 : index
    %c0_19 = arith.constant 0 : index
    %34 = vector.load %arg4[%c0_18, %c0_19] : memref<48x128xf32, #tpu.memory_space<vmem>>, vector<48x128xf32>
    tpu.vector_store %arg4[%c0_18, %c0_19], %33 {strides = array<i32>} : memref<48x128xf32, #tpu.memory_space<vmem>>, vector<48x128xf32>,
    return
  }
}

</mosaic_0001>

<llo_original>
// kernel: gcngru_block_forward.1
$region0: #{gcngru_block_forward.1}
  #allocation0 [shape = 'u32[]', space=smem, size = 0x4, offset = 0x4, fixed_abs, tag = 'smem constant byte address 0x4 - core index']
  #allocation1 [shape = 'u32[72,128]{1,0:T(1,128)}', space=vmem, size = 0x9000, scoped, tag = 'internal scratch']
  %s0 = inlined_call_operand.vmem [shape: f32[48,144], index: 0, kind: input, shape index: {}]
  %s1 = inlined_call_operand.hbm [shape: f32[144,384], index: 1, kind: input, shape index: {}]
  %s2 = inlined_call_operand.vmem [shape: f32[1,384], index: 2, kind: input, shape index: {}]
  %s3 = inlined_call_operand.vmem [shape: f32[2,48,48], index: 3, kind: input, shape index: {}]
  %s4 = inlined_call_operand.vmem [shape: f32[48,128], index: 4, kind: output, shape index: {}]
  %s5 = sld [smem:[#allocation0]]
  $region30: #{gcngru_block_forward.1} parent=0
    _
  %s7 = ssub.s32 1, %s5
  %s8 = scalar_select 0, %s7, %s5
  $region1: #{gcngru_block_forward.1} parent=0
    #allocation2 [shape = 'u8[221184]{0}', space=vmem, size = 0x36000, scoped, tag = 'input window, operand 1, single buffered']
    #allocation3 [shape = 's32[1]{0}', space=sflag, size = 0x4, scoped, tag = 'scoped memory for gcngru_block_forward.1']
    %9 = vsyncpa [#allocation3], 0
    // Predicated region
    $region2: #{gcngru_block_forward.1} parent=1 // pred_check
      _
    $region3: #{gcngru_block_forward.1} parent=1 // pred_check_branch
      %11 = sbr.rel (0) target = $region5
    $region4: #{gcngru_block_forward.1} parent=1 // pred_region
      _
    $region5: #{gcngru_block_forward.1} parent=1 // pred_fallthru
      _
    // Predicated region
    $region6: #{gcngru_block_forward.1} parent=1 // pred_check
      _
    $region7: #{gcngru_block_forward.1} parent=1 // pred_check_branch
      %13 = sbr.rel (0) target = $region9
    $region8: #{gcngru_block_forward.1} parent=1 // pred_region
      %15 = vsyncadd [#allocation3], 0
      %s16 = sshll.u32 %s1, 4
      %s17 = int_to_ptr.hbm [resolvable:$true] %s16
      %s18 = sshll.u32 [#allocation2], 4
      %s19 = int_to_ptr.vmem [resolvable:$true] %s18
      %24 = dma.hbm_to_vmem [thread:$0]  %s17, 6912, %s19, [#allocation3], 384, 384, 24
    $region9: #{gcngru_block_forward.1} parent=1 // pred_fallthru
      _
    // Predicated region
    $region10: #{gcngru_block_forward.1} parent=1 // pred_check
      _
    $region11: #{gcngru_block_forward.1} parent=1 // pred_check_branch
      %26 = sbr.rel (0) target = $region13
    $region12: #{gcngru_block_forward.1} parent=1 // pred_region
      _
    $region13: #{gcngru_block_forward.1} parent=1 // pred_fallthru
      _
    // Predicated region
    $region14: #{gcngru_block_forward.1} parent=1 // pred_check
      _
    $region15: #{gcngru_block_forward.1} parent=1 // pred_check_branch
      %28 = sbr.rel (0) target = $region17
    $region16: #{gcngru_block_forward.1} parent=1 // pred_region
      _
    $region17: #{gcngru_block_forward.1} parent=1 // pred_fallthru
      _
    // Predicated region
    $region18: #{gcngru_block_forward.1} parent=1 // pred_check
      _
    $region19: #{gcngru_block_forward.1} parent=1 // pred_check_branch
      %30 = sbr.rel (0) target = $region21
    $region20: #{gcngru_block_forward.1} parent=1 // pred_region
      %32 = dma.done [#allocation3], 6912
    $region21: #{gcngru_block_forward.1} parent=1 // pred_fallthru
      _
    %v33 = vld [vmem:[%s0] sm:$0xff]
    %v34 = vld [vmem:[%s0 + $0x8] sm:$0xff]
    %v35 = vld [vmem:[%s0 + $0x10] sm:$0xff]
    %v36 = vld [vmem:[%s0 + $0x18] sm:$0xff]
    %v37 = vld [vmem:[%s0 + $0x20] sm:$0xff]
    %v38 = vld [vmem:[%s0 + $0x28] sm:$0xff]
    %v39 = vld [vmem:[%s0 + $0x30] sm:$0xff]
    %v40 = vld [vmem:[%s0 + $0x38] sm:$0xff]
    %v41 = vld [vmem:[%s0 + $0x40] sm:$0xff]
    %v42 = vld [vmem:[%s0 + $0x48] sm:$0xff]
    %v43 = vld [vmem:[%s0 + $0x50] sm:$0xff]
    %v44 = vld [vmem:[%s0 + $0x58] sm:$0xff]
    %v45 = vld [vmem:[#allocation2] sm:$0xff]
    %v46 = vld [vmem:[#allocation2 + $0x8] sm:$0xff]
    %v47 = vld [vmem:[#allocation2 + $0x18] sm:$0xff]
    %v48 = vld [vmem:[#allocation2 + $0x20] sm:$0xff]
    %v49 = vld [vmem:[#allocation2 + $0x30] sm:$0xff]
    %v50 = vld [vmem:[#allocation2 + $0x38] sm:$0xff]
    %v51 = vld [vmem:[#allocation2 + $0x48] sm:$0xff]
    %v52 = vld [vmem:[#allocation2 + $0x50] sm:$0xff]
    %v53 = vld [vmem:[#allocation2 + $0x60] sm:$0xff]
    %v54 = vld [vmem:[#allocation2 + $0x68] sm:$0xff]
    %v55 = vld [vmem:[#allocation2 + $0x78] sm:$0xff]
    %v56 = vld [vmem:[#allocation2 + $0x80] sm:$0xff]
    %v57 = vld [vmem:[#allocation2 + $0x90] sm:$0xff]
    %v58 = vld [vmem:[#allocation2 + $0x98] sm:$0xff]
    %v59 = vld [vmem:[#allocation2 + $0xa8] sm:$0xff]
    %v60 = vld [vmem:[#allocation2 + $0xb0] sm:$0xff]
    %v61 = vld [vmem:[#allocation2 + $0xc0] sm:$0xff]
    %v62 = vld [vmem:[#allocation2 + $0xc8] sm:$0xff]
    %v63 = vld [vmem:[#allocation2 + $0xd8] sm:$0xff]
    %v64 = vld [vmem:[#allocation2 + $0xe0] sm:$0xff]
    %v65 = vld [vmem:[#allocation2 + $0xf0] sm:$0xff]
    %v66 = vld [vmem:[#allocation2 + $0xf8] sm:$0xff]
    %v67 = vld [vmem:[#allocation2 + $0x108] sm:$0xff]
    %v68 = vld [vmem:[#allocation2 + $0x110] sm:$0xff]
    %v69 = vld [vmem:[#allocation2 + $0x120] sm:$0xff]
    %v70 = vld [vmem:[#allocation2 + $0x128] sm:$0xff]
    %v71 = vld [vmem:[#allocation2 + $0x138] sm:$0xff]
    %v72 = vld [vmem:[#allocation2 + $0x140] sm:$0xff]
    %v73 = vld [vmem:[#allocation2 + $0x150] sm:$0xff]
    %v74 = vld [vmem:[#allocation2 + $0x158] sm:$0xff]
    %v75 = vld [vmem:[#allocation2 + $0x168] sm:$0xff]
    %v76 = vld [vmem:[#allocation2 + $0x170] sm:$0xff]
    %v77 = vld [vmem:[#allocation2 + $0x180] sm:$0xff]
    %v78 = vld [vmem:[#allocation2 + $0x188] sm:$0xff]
    %v79 = vld [vmem:[#allocation2 + $0x198] sm:$0xff]
    %v80 = vld [vmem:[#allocation2 + $0x1a0] sm:$0xff]
    %vm81 = vcmask 130048
    %v83 = vsel %vm81, %v34, 0
    %v86 = vsel %vm81, %v36, 0
    %v89 = vsel %vm81, %v38, 0
    %v92 = vsel %vm81, %v40, 0
    %v95 = vsel %vm81, %v42, 0
    %v98 = vsel %vm81, %v44, 0
    %100 = vmatpush.msra.mxu0 %v75
    %101 = vmatpush.msra.mxu0 %v73
    %102 = vmatpush.msra.mxu0 %v71
    %103 = vmatpush.msra.mxu0 %v69
    %104 = vmatpush.msra.mxu0 %v67
    %105 = vmatpush.msra.mxu0 %v65
    %106 = vmatpush.msra.mxu0 %v63
    %107 = vmatpush.msra.mxu0 %v61
    %108 = vmatpush.msra.mxu0 %v59
    %109 = vmatpush.msra.mxu0 %v57
    %110 = vmatpush.msra.mxu0 %v55
    %111 = vmatpush.msra.mxu0 %v53
    %112 = vmatpush.msra.mxu0 %v51
    %113 = vmatpush.msra.mxu0 %v49
    %114 = vmatpush.msra.mxu0 %v47
    %115 = vmatpush.msra.mxu0 %v45
    %116 = vmatmul.f32.gmra.mxu0 %v33
    %v117 = vpop.f32.mrf.mxu0
    %v118 = vadd.f32 0.0, %v117
    %119 = vmatmul.f32.gmra.mxu0 %v35
    %v120 = vpop.f32.mrf.mxu0
    %v121 = vadd.f32 0.0, %v120
    %122 = vmatmul.f32.gmra.mxu0 %v37
    %v123 = vpop.f32.mrf.mxu0
    %v124 = vadd.f32 0.0, %v123
    %125 = vmatmul.f32.gmra.mxu0 %v39
    %v126 = vpop.f32.mrf.mxu0
    %v127 = vadd.f32 0.0, %v126
    %128 = vmatmul.f32.gmra.mxu0 %v41
    %v129 = vpop.f32.mrf.mxu0
    %v130 = vadd.f32 0.0, %v129
    %131 = vmatmul.f32.gmra.mxu0 %v43
    %v132 = vpop.f32.mrf.mxu0
    %v133 = vadd.f32 0.0, %v132
    %134 = vdwg.mxu0
    %135 = vmatpush.msra.mxu0 0.0
    %136 = vmatpush.msra.mxu0 0.0
    %137 = vmatpush.msra.mxu0 0.0
    %138 = vmatpush.msra.mxu0 0.0
    %139 = vmatpush.msra.mxu0 0.0
    %140 = vmatpush.msra.mxu0 0.0
    %141 = vmatpush.msra.mxu0 0.0
    %142 = vmatpush.msra.mxu0 0.0
    %143 = vmatpush.msra.mxu0 0.0
    %144 = vmatpush.msra.mxu0 0.0
    %145 = vmatpush.msra.mxu0 0.0
    %146 = vmatpush.msra.mxu0 0.0
    %147 = vmatpush.msra.mxu0 0.0
    %148 = vmatpush.msra.mxu0 0.0
    %149 = vmatpush.msra.mxu0 %v79
    %150 = vmatpush.msra.mxu0 %v77
    %151 = vmatmul.f32.gmra.mxu0 %v83
    %v152 = vpop.f32.mrf.mxu0
    %v153 = vadd.f32 %v118, %v152
    %154 = vmatmul.f32.gmra.mxu0 %v86
    %v155 = vpop.f32.mrf.mxu0
    %v156 = vadd.f32 %v121, %v155
    %157 = vmatmul.f32.gmra.mxu0 %v89
    %v158 = vpop.f32.mrf.mxu0
    %v159 = vadd.f32 %v124, %v158
    %160 = vmatmul.f32.gmra.mxu0 %v92
    %v161 = vpop.f32.mrf.mxu0
    %v162 = vadd.f32 %v127, %v161
    %163 = vmatmul.f32.gmra.mxu0 %v95
    %v164 = vpop.f32.mrf.mxu0
    %v165 = vadd.f32 %v130, %v164
    %166 = vmatmul.f32.gmra.mxu0 %v98
    %v167 = vpop.f32.mrf.mxu0
    %v168 = vadd.f32 %v133, %v167
    %169 = vdwg.mxu0
    %170 = vmatpush.msra.mxu0 %v76
    %171 = vmatpush.msra.mxu0 %v74
    %172 = vmatpush.msra.mxu0 %v72
    %173 = vmatpush.msra.mxu0 %v70
    %174 = vmatpush.msra.mxu0 %v68
    %175 = vmatpush.msra.mxu0 %v66
    %176 = vmatpush.msra.mxu0 %v64
    %177 = vmatpush.msra.mxu0 %v62
    %178 = vmatpush.msra.mxu0 %v60
    %179 = vmatpush.msra.mxu0 %v58
    %180 = vmatpush.msra.mxu0 %v56
    %181 = vmatpush.msra.mxu0 %v54
    %182 = vmatpush.msra.mxu0 %v52
    %183 = vmatpush.msra.mxu0 %v50
    %184 = vmatpush.msra.mxu0 %v48
    %185 = vmatpush.msra.mxu0 %v46
    %186 = vmatmul.f32.gmra.mxu0 %v33
    %v187 = vpop.f32.mrf.mxu0
    %v188 = vadd.f32 0.0, %v187
    %189 = vmatmul.f32.gmra.mxu0 %v35
    %v190 = vpop.f32.mrf.mxu0
    %v191 = vadd.f32 0.0, %v190
    %192 = vmatmul.f32.gmra.mxu0 %v37
    %v193 = vpop.f32.mrf.mxu0
    %v194 = vadd.f32 0.0, %v193
    %195 = vmatmul.f32.gmra.mxu0 %v39
    %v196 = vpop.f32.mrf.mxu0
    %v197 = vadd.f32 0.0, %v196
    %198 = vmatmul.f32.gmra.mxu0 %v41
    %v199 = vpop.f32.mrf.mxu0
    %v200 = vadd.f32 0.0, %v199
    %201 = vmatmul.f32.gmra.mxu0 %v43
    %v202 = vpop.f32.mrf.mxu0
    %v203 = vadd.f32 0.0, %v202
    %204 = vdwg.mxu0
    %205 = vmatpush.msra.mxu0 0.0
    %206 = vmatpush.msra.mxu0 0.0
    %207 = vmatpush.msra.mxu0 0.0
    %208 = vmatpush.msra.mxu0 0.0
    %209 = vmatpush.msra.mxu0 0.0
    %210 = vmatpush.msra.mxu0 0.0
    %211 = vmatpush.msra.mxu0 0.0
    %212 = vmatpush.msra.mxu0 0.0
    %213 = vmatpush.msra.mxu0 0.0
    %214 = vmatpush.msra.mxu0 0.0
    %215 = vmatpush.msra.mxu0 0.0
    %216 = vmatpush.msra.mxu0 0.0
    %217 = vmatpush.msra.mxu0 0.0
    %218 = vmatpush.msra.mxu0 0.0
    %219 = vmatpush.msra.mxu0 %v80
    %220 = vmatpush.msra.mxu0 %v78
    %221 = vmatmul.f32.gmra.mxu0 %v83
    %v222 = vpop.f32.mrf.mxu0
    %v223 = vadd.f32 %v188, %v222
    %224 = vmatmul.f32.gmra.mxu0 %v86
    %v225 = vpop.f32.mrf.mxu0
    %v226 = vadd.f32 %v191, %v225
    %227 = vmatmul.f32.gmra.mxu0 %v89
    %v228 = vpop.f32.mrf.mxu0
    %v229 = vadd.f32 %v194, %v228
    %230 = vmatmul.f32.gmra.mxu0 %v92
    %v231 = vpop.f32.mrf.mxu0
    %v232 = vadd.f32 %v197, %v231
    %233 = vmatmul.f32.gmra.mxu0 %v95
    %v234 = vpop.f32.mrf.mxu0
    %v235 = vadd.f32 %v200, %v234
    %236 = vmatmul.f32.gmra.mxu0 %v98
    %v237 = vpop.f32.mrf.mxu0
    %v238 = vadd.f32 %v203, %v237
    %239 = vdwg.mxu0
    %v240 = vld [vmem:[%s3] sm:$0xff]
    %v241 = vld [vmem:[%s3 + $0x8] sm:$0xff]
    %v242 = vld [vmem:[%s3 + $0x10] sm:$0xff]
    %v243 = vld [vmem:[%s3 + $0x18] sm:$0xff]
    %v244 = vld [vmem:[%s3 + $0x20] sm:$0xff]
    %v245 = vld [vmem:[%s3 + $0x28] sm:$0xff]
    %v246 = vld [vmem:[%s2] sm:$0x3]
    %v248 = vperm.slane %v246, 0
    %v249 = vperm.slane %v246, 1
    %vm252 = vcmask 392192
    %v254 = vsel %vm252, %v240, 0
    %v257 = vsel %vm252, %v241, 0
    %v260 = vsel %vm252, %v242, 0
    %v263 = vsel %vm252, %v243, 0
    %v266 = vsel %vm252, %v244, 0
    %v269 = vsel %vm252, %v245, 0
    %271 = vmatpush.msra.mxu0 0.0
    %272 = vmatpush.msra.mxu0 0.0
    %273 = vmatpush.msra.mxu0 0.0
    %274 = vmatpush.msra.mxu0 0.0
    %275 = vmatpush.msra.mxu0 0.0
    %276 = vmatpush.msra.mxu0 0.0
    %277 = vmatpush.msra.mxu0 0.0
    %278 = vmatpush.msra.mxu0 0.0
    %279 = vmatpush.msra.mxu0 0.0
    %280 = vmatpush.msra.mxu0 0.0
    %281 = vmatpush.msra.mxu0 %v168
    %282 = vmatpush.msra.mxu0 %v165
    %283 = vmatpush.msra.mxu0 %v162
    %284 = vmatpush.msra.mxu0 %v159
    %285 = vmatpush.msra.mxu0 %v156
    %286 = vmatpush.msra.mxu0 %v153
    %287 = vmatmul.f32.gmra.mxu0 %v254
    %v288 = vpop.f32.mrf.mxu0
    %v289 = vadd.f32 %v248, %v288
    %290 = vmatmul.f32.gmra.mxu0 %v257
    %v291 = vpop.f32.mrf.mxu0
    %v292 = vadd.f32 %v248, %v291
    %293 = vmatmul.f32.gmra.mxu0 %v260
    %v294 = vpop.f32.mrf.mxu0
    %v295 = vadd.f32 %v248, %v294
    %296 = vmatmul.f32.gmra.mxu0 %v263
    %v297 = vpop.f32.mrf.mxu0
    %v298 = vadd.f32 %v248, %v297
    %299 = vmatmul.f32.gmra.mxu0 %v266
    %v300 = vpop.f32.mrf.mxu0
    %v301 = vadd.f32 %v248, %v300
    %302 = vmatmul.f32.gmra.mxu0 %v269
    %v303 = vpop.f32.mrf.mxu0
    %v304 = vadd.f32 %v248, %v303
    %305 = vdwg.mxu0
    %306 = vmatpush.msra.mxu0 0.0
    %307 = vmatpush.msra.mxu0 0.0
    %308 = vmatpush.msra.mxu0 0.0
    %309 = vmatpush.msra.mxu0 0.0
    %310 = vmatpush.msra.mxu0 0.0
    %311 = vmatpush.msra.mxu0 0.0
    %312 = vmatpush.msra.mxu0 0.0
    %313 = vmatpush.msra.mxu0 0.0
    %314 = vmatpush.msra.mxu0 0.0
    %315 = vmatpush.msra.mxu0 0.0
    %316 = vmatpush.msra.mxu0 %v238
    %317 = vmatpush.msra.mxu0 %v235
    %318 = vmatpush.msra.mxu0 %v232
    %319 = vmatpush.msra.mxu0 %v229
    %320 = vmatpush.msra.mxu0 %v226
    %321 = vmatpush.msra.mxu0 %v223
    %322 = vmatmul.f32.gmra.mxu0 %v254
    %v323 = vpop.f32.mrf.mxu0
    %v324 = vadd.f32 %v249, %v323
    %325 = vmatmul.f32.gmra.mxu0 %v257
    %v326 = vpop.f32.mrf.mxu0
    %v327 = vadd.f32 %v249, %v326
    %328 = vmatmul.f32.gmra.mxu0 %v260
    %v329 = vpop.f32.mrf.mxu0
    %v330 = vadd.f32 %v249, %v329
    %331 = vmatmul.f32.gmra.mxu0 %v263
    %v332 = vpop.f32.mrf.mxu0
    %v333 = vadd.f32 %v249, %v332
    %334 = vmatmul.f32.gmra.mxu0 %v266
    %v335 = vpop.f32.mrf.mxu0
    %v336 = vadd.f32 %v249, %v335
    %337 = vmatmul.f32.gmra.mxu0 %v269
    %v338 = vpop.f32.mrf.mxu0
    %v339 = vadd.f32 %v249, %v338
    %340 = vdwg.mxu0
    %v341 = vxor.u32 %v289, 2147483648
    %v342 = vxor.u32 %v324, 2147483648
    %v343 = vxor.u32 %v292, 2147483648
    %v344 = vxor.u32 %v327, 2147483648
    %v345 = vxor.u32 %v295, 2147483648
    %v346 = vxor.u32 %v330, 2147483648
    %v347 = vxor.u32 %v298, 2147483648
    %v348 = vxor.u32 %v333, 2147483648
    %v349 = vxor.u32 %v301, 2147483648
    %v350 = vxor.u32 %v336, 2147483648
    %v351 = vxor.u32 %v304, 2147483648
    %v352 = vxor.u32 %v339, 2147483648
    %v353 = vmul.f32 %v341, 1.442695
    %v354 = vpow.pop %v353
    %v355 = vmul.f32 %v342, 1.442695
    %v356 = vpow.pop %v355
    %v357 = vmul.f32 %v343, 1.442695
    %v358 = vpow.pop %v357
    %v359 = vmul.f32 %v344, 1.442695
    %v360 = vpow.pop %v359
    %v361 = vmul.f32 %v345, 1.442695
    %v362 = vpow.pop %v361
    %v363 = vmul.f32 %v346, 1.442695
    %v364 = vpow.pop %v363
    %v365 = vmul.f32 %v347, 1.442695
    %v366 = vpow.pop %v365
    %v367 = vmul.f32 %v348, 1.442695
    %v368 = vpow.pop %v367
    %v369 = vmul.f32 %v349, 1.442695
    %v370 = vpow.pop %v369
    %v371 = vmul.f32 %v350, 1.442695
    %v372 = vpow.pop %v371
    %v373 = vmul.f32 %v351, 1.442695
    %v374 = vpow.pop %v373
    %v375 = vmul.f32 %v352, 1.442695
    %v376 = vpow.pop %v375
    %v377 = vadd.f32 %v354, 1.0
    %v378 = vadd.f32 %v356, 1.0
    %v379 = vadd.f32 %v358, 1.0
    %v380 = vadd.f32 %v360, 1.0
    %v381 = vadd.f32 %v362, 1.0
    %v382 = vadd.f32 %v364, 1.0
    %v383 = vadd.f32 %v366, 1.0
    %v384 = vadd.f32 %v368, 1.0
    %v385 = vadd.f32 %v370, 1.0
    %v386 = vadd.f32 %v372, 1.0
    %v387 = vadd.f32 %v374, 1.0
    %v388 = vadd.f32 %v376, 1.0
    %v389 = vrcp.pop %v377
    %v390 = vmul.f32 %v377, %v389
    %v391 = vsub.f32 1.0, %v390
    %v392 = vmul.f32 %v389, %v391
    %v393 = vadd.f32 %v389, %v392
    %vm394 = vweird.f32 %v377
    %vm395 = vweird.f32 %v389
    %vm396 = vmor %vm394, %vm395
    %v397 = vsel %vm396, %v389, %v393
    %v398 = vand.u32 2147483647, %v377
    %vm399 = vcmp.eq.f32.partialorder %v398, 8.507059e+37
    %v400 = vand.u32 %v377, 2147483648
    %v401 = vor.u32 1.1754944e-38, %v400
    %v402 = vsel %vm399, %v401, %v397
    %v403 = vmul.f32 1.0, %v402
    %v404 = vrcp.pop %v378
    %v405 = vmul.f32 %v378, %v404
    %v406 = vsub.f32 1.0, %v405
    %v407 = vmul.f32 %v404, %v406
    %v408 = vadd.f32 %v404, %v407
    %vm409 = vweird.f32 %v378
    %vm410 = vweird.f32 %v404
    %vm411 = vmor %vm409, %vm410
    %v412 = vsel %vm411, %v404, %v408
    %v413 = vand.u32 2147483647, %v378
    %vm414 = vcmp.eq.f32.partialorder %v413, 8.507059e+37
    %v415 = vand.u32 %v378, 2147483648
    %v416 = vor.u32 1.1754944e-38, %v415
    %v417 = vsel %vm414, %v416, %v412
    %v418 = vmul.f32 1.0, %v417
    %v419 = vrcp.pop %v379
    %v420 = vmul.f32 %v379, %v419
    %v421 = vsub.f32 1.0, %v420
    %v422 = vmul.f32 %v419, %v421
    %v423 = vadd.f32 %v419, %v422
    %vm424 = vweird.f32 %v379
    %vm425 = vweird.f32 %v419
    %vm426 = vmor %vm424, %vm425
    %v427 = vsel %vm426, %v419, %v423
    %v428 = vand.u32 2147483647, %v379
    %vm429 = vcmp.eq.f32.partialorder %v428, 8.507059e+37
    %v430 = vand.u32 %v379, 2147483648
    %v431 = vor.u32 1.1754944e-38, %v430
    %v432 = vsel %vm429, %v431, %v427
    %v433 = vmul.f32 1.0, %v432
    %v434 = vrcp.pop %v380
    %v435 = vmul.f32 %v380, %v434
    %v436 = vsub.f32 1.0, %v435
    %v437 = vmul.f32 %v434, %v436
    %v438 = vadd.f32 %v434, %v437
    %vm439 = vweird.f32 %v380
    %vm440 = vweird.f32 %v434
    %vm441 = vmor %vm439, %vm440
    %v442 = vsel %vm441, %v434, %v438
    %v443 = vand.u32 2147483647, %v380
    %vm444 = vcmp.eq.f32.partialorder %v443, 8.507059e+37
    %v445 = vand.u32 %v380, 2147483648
    %v446 = vor.u32 1.1754944e-38, %v445
    %v447 = vsel %vm444, %v446, %v442
    %v448 = vmul.f32 1.0, %v447
    %v449 = vrcp.pop %v381
    %v450 = vmul.f32 %v381, %v449
    %v451 = vsub.f32 1.0, %v450
    %v452 = vmul.f32 %v449, %v451
    %v453 = vadd.f32 %v449, %v452
    %vm454 = vweird.f32 %v381
    %vm455 = vweird.f32 %v449
    %vm456 = vmor %vm454, %vm455
    %v457 = vsel %vm456, %v449, %v453
    %v458 = vand.u32 2147483647, %v381
    %vm459 = vcmp.eq.f32.partialorder %v458, 8.507059e+37
    %v460 = vand.u32 %v381, 2147483648
    %v461 = vor.u32 1.1754944e-38, %v460
    %v462 = vsel %vm459, %v461, %v457
    %v463 = vmul.f32 1.0, %v462
    %v464 = vrcp.pop %v382
    %v465 = vmul.f32 %v382, %v464
    %v466 = vsub.f32 1.0, %v465
    %v467 = vmul.f32 %v464, %v466
    %v468 = vadd.f32 %v464, %v467
    %vm469 = vweird.f32 %v382
    %vm470 = vweird.f32 %v464
    %vm471 = vmor %vm469, %vm470
    %v472 = vsel %vm471, %v464, %v468
    %v473 = vand.u32 2147483647, %v382
    %vm474 = vcmp.eq.f32.partialorder %v473, 8.507059e+37
    %v475 = vand.u32 %v382, 2147483648
    %v476 = vor.u32 1.1754944e-38, %v475
    %v477 = vsel %vm474, %v476, %v472
    %v478 = vmul.f32 1.0, %v477
    %v479 = vrcp.pop %v383
    %v480 = vmul.f32 %v383, %v479
    %v481 = vsub.f32 1.0, %v480
    %v482 = vmul.f32 %v479, %v481
    %v483 = vadd.f32 %v479, %v482
    %vm484 = vweird.f32 %v383
    %vm485 = vweird.f32 %v479
    %vm486 = vmor %vm484, %vm485
    %v487 = vsel %vm486, %v479, %v483
    %v488 = vand.u32 2147483647, %v383
    %vm489 = vcmp.eq.f32.partialorder %v488, 8.507059e+37
    %v490 = vand.u32 %v383, 2147483648
    %v491 = vor.u32 1.1754944e-38, %v490
    %v492 = vsel %vm489, %v491, %v487
    %v493 = vmul.f32 1.0, %v492
    %v494 = vrcp.pop %v384
    %v495 = vmul.f32 %v384, %v494
    %v496 = vsub.f32 1.0, %v495
    %v497 = vmul.f32 %v494, %v496
    %v498 = vadd.f32 %v494, %v497
    %vm499 = vweird.f32 %v384
    %vm500 = vweird.f32 %v494
    %vm501 = vmor %vm499, %vm500
    %v502 = vsel %vm501, %v494, %v498
    %v503 = vand.u32 2147483647, %v384
    %vm504 = vcmp.eq.f32.partialorder %v503, 8.507059e+37
    %v505 = vand.u32 %v384, 2147483648
    %v506 = vor.u32 1.1754944e-38, %v505
    %v507 = vsel %vm504, %v506, %v502
    %v508 = vmul.f32 1.0, %v507
    %v509 = vrcp.pop %v385
    %v510 = vmul.f32 %v385, %v509
    %v511 = vsub.f32 1.0, %v510
    %v512 = vmul.f32 %v509, %v511
    %v513 = vadd.f32 %v509, %v512
    %vm514 = vweird.f32 %v385
    %vm515 = vweird.f32 %v509
    %vm516 = vmor %vm514, %vm515
    %v517 = vsel %vm516, %v509, %v513
    %v518 = vand.u32 2147483647, %v385
    %vm519 = vcmp.eq.f32.partialorder %v518, 8.507059e+37
    %v520 = vand.u32 %v385, 2147483648
    %v521 = vor.u32 1.1754944e-38, %v520
    %v522 = vsel %vm519, %v521, %v517
    %v523 = vmul.f32 1.0, %v522
    %v524 = vrcp.pop %v386
    %v525 = vmul.f32 %v386, %v524
    %v526 = vsub.f32 1.0, %v525
    %v527 = vmul.f32 %v524, %v526
    %v528 = vadd.f32 %v524, %v527
    %vm529 = vweird.f32 %v386
    %vm530 = vweird.f32 %v524
    %vm531 = vmor %vm529, %vm530
    %v532 = vsel %vm531, %v524, %v528
    %v533 = vand.u32 2147483647, %v386
    %vm534 = vcmp.eq.f32.partialorder %v533, 8.507059e+37
    %v535 = vand.u32 %v386, 2147483648
    %v536 = vor.u32 1.1754944e-38, %v535
    %v537 = vsel %vm534, %v536, %v532
    %v538 = vmul.f32 1.0, %v537
    %v539 = vrcp.pop %v387
    %v540 = vmul.f32 %v387, %v539
    %v541 = vsub.f32 1.0, %v540
    %v542 = vmul.f32 %v539, %v541
    %v543 = vadd.f32 %v539, %v542
    %vm544 = vweird.f32 %v387
    %vm545 = vweird.f32 %v539
    %vm546 = vmor %vm544, %vm545
    %v547 = vsel %vm546, %v539, %v543
    %v548 = vand.u32 2147483647, %v387
    %vm549 = vcmp.eq.f32.partialorder %v548, 8.507059e+37
    %v550 = vand.u32 %v387, 2147483648
    %v551 = vor.u32 1.1754944e-38, %v550
    %v552 = vsel %vm549, %v551, %v547
    %v553 = vmul.f32 1.0, %v552
    %v554 = vrcp.pop %v388
    %v555 = vmul.f32 %v388, %v554
    %v556 = vsub.f32 1.0, %v555
    %v557 = vmul.f32 %v554, %v556
    %v558 = vadd.f32 %v554, %v557
    %vm559 = vweird.f32 %v388
    %vm560 = vweird.f32 %v554
    %vm561 = vmor %vm559, %vm560
    %v562 = vsel %vm561, %v554, %v558
    %v563 = vand.u32 2147483647, %v388
    %vm564 = vcmp.eq.f32.partialorder %v563, 8.507059e+37
    %v565 = vand.u32 %v388, 2147483648
    %v566 = vor.u32 1.1754944e-38, %v565
    %v567 = vsel %vm564, %v566, %v562
    %v568 = vmul.f32 1.0, %v567
    %v569 = vmul.f32 %v403, %v33
    %v570 = vmul.f32 %v433, %v35
    %v571 = vmul.f32 %v463, %v37
    %v572 = vmul.f32 %v493, %v39
    %v573 = vmul.f32 %v523, %v41
    %v574 = vmul.f32 %v553, %v43
    %v575 = vld [vmem:[#allocation2 + $0x10] sm:$0xff]
    %v576 = vld [vmem:[#allocation2 + $0x28] sm:$0xff]
    %v577 = vld [vmem:[#allocation2 + $0x40] sm:$0xff]
    %v578 = vld [vmem:[#allocation2 + $0x58] sm:$0xff]
    %v579 = vld [vmem:[#allocation2 + $0x70] sm:$0xff]
    %v580 = vld [vmem:[#allocation2 + $0x88] sm:$0xff]
    %v581 = vld [vmem:[#allocation2 + $0xa0] sm:$0xff]
    %v582 = vld [vmem:[#allocation2 + $0xb8] sm:$0xff]
    %v583 = vld [vmem:[#allocation2 + $0xd0] sm:$0xff]
    %v584 = vld [vmem:[#allocation2 + $0xe8] sm:$0xff]
    %v585 = vld [vmem:[#allocation2 + $0x100] sm:$0xff]
    %v586 = vld [vmem:[#allocation2 + $0x118] sm:$0xff]
    %v587 = vld [vmem:[#allocation2 + $0x130] sm:$0xff]
    %v588 = vld [vmem:[#allocation2 + $0x148] sm:$0xff]
    %v589 = vld [vmem:[#allocation2 + $0x160] sm:$0xff]
    %v590 = vld [vmem:[#allocation2 + $0x178] sm:$0xff]
    %v591 = vld [vmem:[#allocation2 + $0x190] sm:$0xff]
    %v592 = vld [vmem:[#allocation2 + $0x1a8] sm:$0xff]
    %593 = vmatpush.msra.mxu0 %v590
    %594 = vmatpush.msra.mxu0 %v589
    %595 = vmatpush.msra.mxu0 %v588
    %596 = vmatpush.msra.mxu0 %v587
    %597 = vmatpush.msra.mxu0 %v586
    %598 = vmatpush.msra.mxu0 %v585
    %599 = vmatpush.msra.mxu0 %v584
    %600 = vmatpush.msra.mxu0 %v583
    %601 = vmatpush.msra.mxu0 %v582
    %602 = vmatpush.msra.mxu0 %v581
    %603 = vmatpush.msra.mxu0 %v580
    %604 = vmatpush.msra.mxu0 %v579
    %605 = vmatpush.msra.mxu0 %v578
    %606 = vmatpush.msra.mxu0 %v577
    %607 = vmatpush.msra.mxu0 %v576
    %608 = vmatpush.msra.mxu0 %v575
    %609 = vmatmul.f32.gmra.mxu0 %v569
    %v610 = vpop.f32.mrf.mxu0
    %v611 = vadd.f32 0.0, %v610
    %612 = vmatmul.f32.gmra.mxu0 %v570
    %v613 = vpop.f32.mrf.mxu0
    %v614 = vadd.f32 0.0, %v613
    %615 = vmatmul.f32.gmra.mxu0 %v571
    %v616 = vpop.f32.mrf.mxu0
    %v617 = vadd.f32 0.0, %v616
    %618 = vmatmul.f32.gmra.mxu0 %v572
    %v619 = vpop.f32.mrf.mxu0
    %v620 = vadd.f32 0.0, %v619
    %621 = vmatmul.f32.gmra.mxu0 %v573
    %v622 = vpop.f32.mrf.mxu0
    %v623 = vadd.f32 0.0, %v622
    %624 = vmatmul.f32.gmra.mxu0 %v574
    %v625 = vpop.f32.mrf.mxu0
    %v626 = vadd.f32 0.0, %v625
    %627 = vdwg.mxu0
    %628 = vmatpush.msra.mxu0 0.0
    %629 = vmatpush.msra.mxu0 0.0
    %630 = vmatpush.msra.mxu0 0.0
    %631 = vmatpush.msra.mxu0 0.0
    %632 = vmatpush.msra.mxu0 0.0
    %633 = vmatpush.msra.mxu0 0.0
    %634 = vmatpush.msra.mxu0 0.0
    %635 = vmatpush.msra.mxu0 0.0
    %636 = vmatpush.msra.mxu0 0.0
    %637 = vmatpush.msra.mxu0 0.0
    %638 = vmatpush.msra.mxu0 0.0
    %639 = vmatpush.msra.mxu0 0.0
    %640 = vmatpush.msra.mxu0 0.0
    %641 = vmatpush.msra.mxu0 0.0
    %642 = vmatpush.msra.mxu0 %v592
    %643 = vmatpush.msra.mxu0 %v591
    %644 = vmatmul.f32.gmra.mxu0 %v83
    %v645 = vpop.f32.mrf.mxu0
    %v646 = vadd.f32 %v611, %v645
    %647 = vmatmul.f32.gmra.mxu0 %v86
    %v648 = vpop.f32.mrf.mxu0
    %v649 = vadd.f32 %v614, %v648
    %650 = vmatmul.f32.gmra.mxu0 %v89
    %v651 = vpop.f32.mrf.mxu0
    %v652 = vadd.f32 %v617, %v651
    %653 = vmatmul.f32.gmra.mxu0 %v92
    %v654 = vpop.f32.mrf.mxu0
    %v655 = vadd.f32 %v620, %v654
    %656 = vmatmul.f32.gmra.mxu0 %v95
    %v657 = vpop.f32.mrf.mxu0
    %v658 = vadd.f32 %v623, %v657
    %659 = vmatmul.f32.gmra.mxu0 %v98
    %v660 = vpop.f32.mrf.mxu0
    %v661 = vadd.f32 %v626, %v660
    %662 = vdwg.mxu0
    %s663 = scalar_lea.vmem %s3, 48
    %v664 = vld [vmem:[%s663] sm:$0xff]
    %v665 = vld [vmem:[%s663 + $0x8] sm:$0xff]
    %v666 = vld [vmem:[%s663 + $0x10] sm:$0xff]
    %v667 = vld [vmem:[%s663 + $0x18] sm:$0xff]
    %v668 = vld [vmem:[%s663 + $0x20] sm:$0xff]
    %v669 = vld [vmem:[%s663 + $0x28] sm:$0xff]
    %v670 = vld [vmem:[%s2 + $0x2] sm:$0x1]
    %v672 = vperm.slane %v670, 0
    %v675 = vsel %vm252, %v664, 0
    %v678 = vsel %vm252, %v665, 0
    %v681 = vsel %vm252, %v666, 0
    %v684 = vsel %vm252, %v667, 0
    %v687 = vsel %vm252, %v668, 0
    %v690 = vsel %vm252, %v669, 0
    %692 = vmatpush.msra.mxu0 0.0
    %693 = vmatpush.msra.mxu0 0.0
    %694 = vmatpush.msra.mxu0 0.0
    %695 = vmatpush.msra.mxu0 0.0
    %696 = vmatpush.msra.mxu0 0.0
    %697 = vmatpush.msra.mxu0 0.0
    %698 = vmatpush.msra.mxu0 0.0
    %699 = vmatpush.msra.mxu0 0.0
    %700 = vmatpush.msra.mxu0 0.0
    %701 = vmatpush.msra.mxu0 0.0
    %702 = vmatpush.msra.mxu0 %v661
    %703 = vmatpush.msra.mxu0 %v658
    %704 = vmatpush.msra.mxu0 %v655
    %705 = vmatpush.msra.mxu0 %v652
    %706 = vmatpush.msra.mxu0 %v649
    %707 = vmatpush.msra.mxu0 %v646
    %708 = vmatmul.f32.gmra.mxu0 %v675
    %v709 = vpop.f32.mrf.mxu0
    %v710 = vadd.f32 %v672, %v709
    %711 = vmatmul.f32.gmra.mxu0 %v678
    %v712 = vpop.f32.mrf.mxu0
    %v713 = vadd.f32 %v672, %v712
    %714 = vmatmul.f32.gmra.mxu0 %v681
    %v715 = vpop.f32.mrf.mxu0
    %v716 = vadd.f32 %v672, %v715
    %717 = vmatmul.f32.gmra.mxu0 %v684
    %v718 = vpop.f32.mrf.mxu0
    %v719 = vadd.f32 %v672, %v718
    %720 = vmatmul.f32.gmra.mxu0 %v687
    %v721 = vpop.f32.mrf.mxu0
    %v722 = vadd.f32 %v672, %v721
    %723 = vmatmul.f32.gmra.mxu0 %v690
    %v724 = vpop.f32.mrf.mxu0
    %v725 = vadd.f32 %v672, %v724
    %726 = vdwg.mxu0
    %v727 = vtanh.pop %v710
    %v728 = vtanh.pop %v713
    %v729 = vtanh.pop %v716
    %v730 = vtanh.pop %v719
    %v731 = vtanh.pop %v722
    %v732 = vtanh.pop %v725
    %v733 = vsub.f32 1.0, %v418
    %v734 = vsub.f32 1.0, %v448
    %v735 = vsub.f32 1.0, %v478
    %v736 = vsub.f32 1.0, %v508
    %v737 = vsub.f32 1.0, %v538
    %v738 = vsub.f32 1.0, %v568
    %v739 = vmul.f32 %v733, %v33
    %v740 = vmul.f32 %v734, %v35
    %v741 = vmul.f32 %v735, %v37
    %v742 = vmul.f32 %v736, %v39
    %v743 = vmul.f32 %v737, %v41
    %v744 = vmul.f32 %v738, %v43
    %v745 = vmul.f32 %v418, %v727
    %v746 = vmul.f32 %v448, %v728
    %v747 = vmul.f32 %v478, %v729
    %v748 = vmul.f32 %v508, %v730
    %v749 = vmul.f32 %v538, %v731
    %v750 = vmul.f32 %v568, %v732
    %v751 = vadd.f32 %v739, %v745
    %v752 = vadd.f32 %v740, %v746
    %v753 = vadd.f32 %v741, %v747
    %v754 = vadd.f32 %v742, %v748
    %v755 = vadd.f32 %v743, %v749
    %v756 = vadd.f32 %v744, %v750
    %757 = vst [vmem:[%s4] sm:$0xff] %v751
    %758 = vst [vmem:[%s4 + $0x8] sm:$0xff] %v752
    %759 = vst [vmem:[%s4 + $0x10] sm:$0xff] %v753
    %760 = vst [vmem:[%s4 + $0x18] sm:$0xff] %v754
    %761 = vst [vmem:[%s4 + $0x20] sm:$0xff] %v755
    %762 = vst [vmem:[%s4 + $0x28] sm:$0xff] %v756
    // Predicated region
    $region22: #{gcngru_block_forward.1} parent=1 // pred_check
      _
    $region23: #{gcngru_block_forward.1} parent=1 // pred_check_branch
      %764 = sbr.rel (0) target = $region25
    $region24: #{gcngru_block_forward.1} parent=1 // pred_region
      _
    $region25: #{gcngru_block_forward.1} parent=1 // pred_fallthru
      _
    // Predicated region
    $region26: #{gcngru_block_forward.1} parent=1 // pred_check
      _
    $region27: #{gcngru_block_forward.1} parent=1 // pred_check_branch
      %766 = sbr.rel (0) target = $region29
    $region28: #{gcngru_block_forward.1} parent=1 // pred_region
      _
    $region29: #{gcngru_block_forward.1} parent=1 // pred_fallthru
      _
    %767 = vsyncpa [#allocation3], 1

</llo_original>
